<compile_context>
chip_gen: v7x
topology: tpu7x:2x2x1
jax: 0.10.0
libtpu: 0.0.40
codegen_flags: <defaults>
</compile_context>

<pallas_src>
import functools

import jax
import jax.numpy as jnp
from jax.experimental import pallas as pl
from jax.experimental.pallas import tpu as pltpu


def _first2_sub1_kernel(x_ref, o_ref, *, idx0, idx1):
    # Pure scalar path: two SMEM loads, two scalar subtracts, two SMEM stores.
    # The payload is 8 bytes; keeping it off the vector path avoids the padded
    # 4 KiB VMEM tile DMA and the masked partial vector store.
    one = jnp.asarray(1, dtype=o_ref.dtype)  # dtype-safe (int inputs stay int)
    o_ref[0] = x_ref[idx0] - one
    o_ref[1] = x_ref[idx1] - one


def _unravel(flat_index: int, shape) -> tuple:
    # Trace-time unravel of a row-major flat index into a multi-dim index.
    idx = []
    for s in pl.strides_from_shape(shape):
        idx.append(flat_index // s)
        flat_index = flat_index % s
    return tuple(idx)


def model_forward(x: jax.Array) -> jax.Array:
    # torch: y = x.view(-1); z = y.narrow(0,0,2).squeeze(0).unsqueeze(0)
    #        x2 = z[0]; return x2.add(-1)     -> first 2 flattened elems, -1
    if x.size < 2:
        raise ValueError("input needs >= 2 elements (same requirement as torch narrow)")

    out_shape = jax.ShapeDtypeStruct((2,), x.dtype)
    smem_spec = pl.BlockSpec(memory_space=pltpu.MemorySpace.SMEM)

    small = x.ndim <= 2 and x.size <= 1024
    if small:
        # Main path (covers the spec's (5,5) input): pass x directly, do the
        # narrow with static scalar indices inside the kernel.  One dispatch,
        # no HBM intermediate.
        kernel = functools.partial(
            _first2_sub1_kernel,
            idx0=_unravel(0, x.shape),
            idx1=_unravel(1, x.shape),
        )
        return pl.pallas_call(
            kernel,
            out_shape=out_shape,
            in_specs=[smem_spec],
            out_specs=smem_spec,
            # Advisory: this custom call is ~free; don't serialize around it.
            cost_estimate=pl.CostEstimate(
                flops=2,
                transcendentals=0,
                bytes_accessed=(x.size + 2) * x.dtype.itemsize,
            ),
        )(x)

    # Fallback for large / high-rank inputs: don't stage the whole array into
    # SMEM.  Slice the 2 live elements in the wrapper and let XLA fuse that
    # slice into the custom call's operand (no standalone slice dispatch).
    y2 = x.reshape(-1)[:2]
    kernel = functools.partial(_first2_sub1_kernel, idx0=(0,), idx1=(1,))
    return pl.pallas_call(
        kernel,
        out_shape=out_shape,
        in_specs=[smem_spec],
        out_specs=smem_spec,
        cost_estimate=pl.CostEstimate(
            flops=2, transcendentals=0, bytes_accessed=4 * x.dtype.itemsize
        ),
        compiler_params=pltpu.CompilerParams(allow_input_fusion=[True]),
    )(y2)


if __name__ == "__main__":
    key = jax.random.PRNGKey(0)
    k1, k2 = jax.random.split(key)

    fwd = jax.jit(model_forward)

    # Spec shape from the original module: x = torch.randn(5, 5).
    x = jax.random.normal(k1, (5, 5), dtype=jnp.float32)
    out = jax.block_until_ready(fwd(x))
    ref = x.reshape(-1)[:2] - 1.0
    assert out.shape == (2,), out.shape
    assert jnp.allclose(out, ref, atol=1e-6), (out, ref)

    # Also exercise the large/high-rank fallback path (wrapper slice fused
    # into the custom call via allow_input_fusion).
    x_big = jax.random.normal(k2, (4, 8, 8), dtype=jnp.float32)
    out_big = jax.block_until_ready(fwd(x_big))
    ref_big = x_big.reshape(-1)[:2] - 1.0
    assert out_big.shape == (2,), out_big.shape
    assert jnp.allclose(out_big, ref_big, atol=1e-6), (out_big, ref_big)

    print("KERNEL_OK")
</pallas_src>

<mosaic_0001>
module attributes {stable_mosaic.version = 11 : i64} {
  func.func @_first2_sub1_kernel(%arg0: memref<5x5xf32, #tpu.memory_space<smem>>, %arg1: memref<2xf32, #tpu.memory_space<smem>>) attributes {dimension_semantics = [], scalar_prefetch = 0 : i64, scratch_operands = 0 : i64, tpu.core_type = #tpu.core_type<tc>} {
    %c0 = arith.constant 0 : index
    %c0_0 = arith.constant 0 : index
    %0 = memref.load %arg0[%c0, %c0_0] : memref<5x5xf32, #tpu.memory_space<smem>>
    %cst = arith.constant 1.000000e+00 : f32
    %1 = arith.subf %0, %cst : f32
    %c0_1 = arith.constant 0 : index
    %2 = memref.load %arg1[%c0_1] : memref<2xf32, #tpu.memory_space<smem>>
    memref.store %1, %arg1[%c0_1] : memref<2xf32, #tpu.memory_space<smem>>
    %c0_2 = arith.constant 0 : index
    %c1 = arith.constant 1 : index
    %3 = memref.load %arg0[%c0_2, %c1] : memref<5x5xf32, #tpu.memory_space<smem>>
    %cst_3 = arith.constant 1.000000e+00 : f32
    %4 = arith.subf %3, %cst_3 : f32
    %c1_4 = arith.constant 1 : index
    %5 = memref.load %arg1[%c1_4] : memref<2xf32, #tpu.memory_space<smem>>
    memref.store %4, %arg1[%c1_4] : memref<2xf32, #tpu.memory_space<smem>>
    return
  }
}

</mosaic_0001>

<llo_original>
// kernel: model_forward.1
$region0: #{model_forward.1}
  #allocation0 [shape = 'u32[]', space=smem, size = 0x4, offset = 0x4, fixed_abs, tag = 'smem constant byte address 0x4 - core index']
  #allocation1 [shape = 'u32[144,128]{1,0:T(1,128)}', space=vmem, size = 0x12000, scoped, tag = 'internal scratch']
  %s0 = inlined_call_operand.hbm [shape: f32[5,5], index: 0, kind: input, shape index: {}]
  %s1 = inlined_call_operand.hbm [shape: f32[2], index: 1, kind: output, shape index: {}]
  %s2 = sld [smem:[#allocation0]]
  $region18: #{model_forward.1} parent=0
    _
  %s4 = ssub.s32 1, %s2
  %s5 = scalar_select 0, %s4, %s2
  $region1: #{model_forward.1} parent=0
    #allocation2 [shape = 'u8[4096]{0}', space=smem, size = 0x1000, scoped, tag = 'input window, operand 0, single buffered']
    #allocation3 [shape = 's32[1]{0}', space=sflag, size = 0x4, scoped, tag = 'scoped memory for model_forward.1']
    #allocation4 [shape = 's32[1]{0}', space=sflag, size = 0x4, scoped, tag = 'scoped memory for model_forward.1']
    #allocation5 [shape = 'u8[512]{0}', space=smem, size = 0x200, scoped, tag = 'output window, operand 0, single buffered']
    %6 = vsyncpa [#allocation3], 0
    %7 = vsyncpa [#allocation4], 0
    // Predicated region
    $region2: #{model_forward.1} parent=1 // pred_check
      _
    $region3: #{model_forward.1} parent=1 // pred_check_branch
      %9 = sbr.rel (0) target = $region5
    $region4: #{model_forward.1} parent=1 // pred_region
      %s11 = ssub.s32 128, 128
      %12 = vsyncadd [#allocation3], %s11
      %15 = dma.hbm_to_smem %s0, 128, [#allocation2], [#allocation3]
    $region5: #{model_forward.1} parent=1 // pred_fallthru
      _
    // Predicated region
    $region6: #{model_forward.1} parent=1 // pred_check
      _
    $region7: #{model_forward.1} parent=1 // pred_check_branch
      %17 = sbr.rel (0) target = $region9
    $region8: #{model_forward.1} parent=1 // pred_region
      %18 = dma.done [#allocation3], 128
    $region9: #{model_forward.1} parent=1 // pred_fallthru
      _
    %19 = sfence
    %s20 = sld [smem:[#allocation2]]
    %s21 = ssub.f32 %s20, 1.0
    %s22 = scalar_lea.smem [#allocation5], 0
    %23 = sst [smem:[%s22]] %s21
    %s24 = sld [smem:[#allocation2 + $0x1]]
    %s25 = ssub.f32 %s24, 1.0
    %s26 = scalar_lea.smem [#allocation5], 1
    %27 = sst [smem:[%s26]] %s25
    // Predicated region
    $region10: #{model_forward.1} parent=1 // pred_check
      _
    $region11: #{model_forward.1} parent=1 // pred_check_branch
      %29 = sbr.rel (0) target = $region13
    $region12: #{model_forward.1} parent=1 // pred_region
      %s31 = ssub.s32 16, 16
      %32 = vsyncadd [#allocation4], %s31
      %35 = dma.smem_to_hbm [#allocation5], 16, %s1, [#allocation4]
    $region13: #{model_forward.1} parent=1 // pred_fallthru
      _
    // Predicated region
    $region14: #{model_forward.1} parent=1 // pred_check
      _
    $region15: #{model_forward.1} parent=1 // pred_check_branch
      %37 = sbr.rel (0) target = $region17
    $region16: #{model_forward.1} parent=1 // pred_region
      %38 = dma.done [#allocation4], 16
    $region17: #{model_forward.1} parent=1 // pred_fallthru
      _
    %39 = sfence
    %40 = vsyncpa [#allocation3], 1
    %41 = vsyncpa [#allocation4], 1

</llo_original>
